<compile_context>
chip_gen: v5e
topology: v5e:2x2
jax: 0.10.0
libtpu: 0.0.40
codegen_flags: <defaults>
</compile_context>

<pallas_src>
import functools

import jax
import jax.numpy as jnp
from jax.experimental import pallas as pl
from jax.experimental.pallas import tpu as pltpu


def _tconv_kernel(x_ref, w_ref, b_ref, o_ref, *, kt, c_out, n_nodes, act):
    # x_ref : (Bb, c_in, T*N)           (param dtype)
    # w_ref : (c_mult*c_out, kt*c_in)   residual already folded in (param dtype)
    # b_ref : (c_mult*c_out, 1)         float32
    # o_ref : (Bb, c_out, Tout*N)       float32
    bb_block = x_ref.shape[0]
    tout_n = o_ref.shape[2]

    w = w_ref[...]
    b = b_ref[...].astype(jnp.float32)

    for bb in range(bb_block):  # small static batch block -> unrolled
        xb = x_ref[bb]  # (c_in, T*N)
        # im2col: the kt temporal taps are static lane-offset slices of the flat (T*N) axis
        rhs = jnp.concatenate(
            [xb[:, tau * n_nodes: tau * n_nodes + tout_n] for tau in range(kt)],
            axis=0)  # (kt*c_in, Tout*N)
        acc = jnp.dot(w, rhs, preferred_element_type=jnp.float32) + b
        if act == "GLU":
            out = acc[:c_out] * jax.nn.sigmoid(acc[c_out:])
        elif act == "sigmoid":
            out = jax.nn.sigmoid(acc)
        else:  # 'relu'
            out = jnp.maximum(acc, 0.0)
        o_ref[bb] = out.astype(o_ref.dtype)


def temporal_conv_layer_forward(x_nchw, conv_w, conv_b, align_w, align_b, *,
                                kt, c_in, c_out, act, param_dtype=jnp.float32):
    """x_nchw: (B, c_in, T, N) float32 (PyTorch layout). Returns (B, c_out, T-kt+1, N) f32."""
    B, C, T, N = x_nchw.shape
    assert C == c_in
    Tout = T - kt + 1
    c_mult = 2 if act == "GLU" else 1
    O = c_mult * c_out

    # ---- fold the residual ("align") path into the last temporal tap of the conv ----
    # y = conv(x) ; x_in = align(x)[:, :, kt-1:, :]   and the residual always adds onto the
    # first c_out output channels, so  W'[:c_out, :, kt-1] += A,  b'[:c_out] += align bias,
    # where A is the 1x1-conv weight (c_in > c_out) or an identity / zero-padded identity.
    W = conv_w[..., 0].astype(jnp.float32)          # (O, c_in, kt)
    bias = conv_b.astype(jnp.float32)               # (O,)
    if c_in > c_out:
        A = align_w[:, :, 0, 0].astype(jnp.float32)  # (c_out, c_in)
        bias = bias.at[:c_out].add(align_b.astype(jnp.float32))
    else:  # 'pad' (c_in < c_out) or identity (c_in == c_out)
        A = jnp.eye(c_out, c_in, dtype=jnp.float32)
    W = W.at[:c_out, :, kt - 1].add(A)
    # flatten to (O, kt*c_in), row order tau-major to match the in-kernel im2col concat
    W_flat = jnp.transpose(W, (0, 2, 1)).reshape(O, kt * c_in).astype(param_dtype)
    b_col = bias.reshape(O, 1)

    # ---- inputs: keep NCHW, just merge (T, N) -> T*N (free reshape, no transpose) ----
    x_flat = x_nchw.reshape(B, c_in, T * N).astype(param_dtype)

    # ---- batch tiling: several samples per grid step, sized against a VMEM budget ----
    itemsize = jnp.dtype(param_dtype).itemsize
    per_b_bytes = c_in * T * N * itemsize + c_out * Tout * N * 4
    budget = 4 * 1024 * 1024                       # per-buffer budget (double-buffered)
    b_block = max(1, min(B, budget // max(per_b_bytes, 1)))
    b_block = min(b_block, 8)                      # keep the unrolled in-kernel loop short
    if B >= 2:
        b_block = min(b_block, pl.cdiv(B, 2))      # >= 2 grid steps for megacore / 2 TCs
    n_blocks = pl.cdiv(B, b_block)
    B_pad = n_blocks * b_block
    if B_pad != B:
        x_flat = jnp.pad(x_flat, ((0, B_pad - B), (0, 0), (0, 0)))

    kernel = functools.partial(_tconv_kernel, kt=kt, c_out=c_out, n_nodes=N, act=act)

    out = pl.pallas_call(
        kernel,
        out_shape=jax.ShapeDtypeStruct((B_pad, c_out, Tout * N), jnp.float32),
        grid=(n_blocks,),
        in_specs=[
            pl.BlockSpec((b_block, c_in, T * N), lambda i: (i, 0, 0)),
            pl.BlockSpec((O, kt * c_in), lambda i: (0, 0)),
            pl.BlockSpec((O, 1), lambda i: (0, 0)),
        ],
        out_specs=pl.BlockSpec((b_block, c_out, Tout * N), lambda i: (i, 0, 0)),
        compiler_params=pltpu.CompilerParams(dimension_semantics=("parallel",)),
    )(x_flat, W_flat, b_col)

    # already NCHW: just un-merge (Tout*N) -> (Tout, N) and drop batch padding
    return out[:B].reshape(B, c_out, Tout, N)


def _reference(x_nchw, conv_w, conv_b, align_w, align_b, *, kt, c_in, c_out, act):
    """Pure-JAX reference matching PyTorch semantics exactly (NCHW, float32)."""
    B, _, T, N = x_nchw.shape
    Tout = T - kt + 1
    patches = jnp.stack([x_nchw[:, :, tau:tau + Tout, :] for tau in range(kt)],
                        axis=2)                                  # (B, c_in, kt, Tout, N)
    y = jnp.einsum("bcktn,ock->botn", patches, conv_w[..., 0]) \
        + conv_b[None, :, None, None]
    if c_in > c_out:
        x_al = jnp.einsum("bctn,oc->botn", x_nchw, align_w[:, :, 0, 0]) \
            + align_b[None, :, None, None]
    elif c_in < c_out:
        x_al = jnp.pad(x_nchw, ((0, 0), (0, c_out - c_in), (0, 0), (0, 0)))
    else:
        x_al = x_nchw
    x_in = x_al[:, :, kt - 1:, :]
    if act == "GLU":
        return (y[:, :c_out] + x_in) * jax.nn.sigmoid(y[:, c_out:])
    if act == "sigmoid":
        return jax.nn.sigmoid(y + x_in)
    return jnp.maximum(y + x_in, 0.0)


def _make_params(key, kt, c_in, c_out, act):
    c_mult = 2 if act == "GLU" else 1
    k1, k2, k3, k4 = jax.random.split(key, 4)
    conv_w = jax.random.normal(k1, (c_mult * c_out, c_in, kt, 1), jnp.float32) * 0.1
    conv_b = jax.random.normal(k2, (c_mult * c_out,), jnp.float32) * 0.1
    align_w = jax.random.normal(k3, (c_out, c_in, 1, 1), jnp.float32) * 0.1
    align_b = jax.random.normal(k4, (c_out,), jnp.float32) * 0.1
    return conv_w, conv_b, align_w, align_b


if __name__ == "__main__":
    key = jax.random.PRNGKey(0)
    B, T, N = 2, 12, 16

    # Config 1: GLU activation, c_in < c_out (align = zero-pad channels), float32
    kt, c_in, c_out, act = 3, 4, 8, "GLU"
    kx, kp = jax.random.split(key)
    x = jax.random.normal(kx, (B, c_in, T, N), jnp.float32)
    conv_w, conv_b, align_w, align_b = _make_params(kp, kt, c_in, c_out, act)
    out = temporal_conv_layer_forward(x, conv_w, conv_b, align_w, align_b,
                                      kt=kt, c_in=c_in, c_out=c_out, act=act)
    out = jax.block_until_ready(out)
    ref = _reference(x, conv_w, conv_b, align_w, align_b,
                     kt=kt, c_in=c_in, c_out=c_out, act=act)
    assert out.shape == (B, c_out, T - kt + 1, N)
    assert jnp.allclose(out, ref, rtol=1e-4, atol=1e-4)

    # Config 2: relu activation, c_in > c_out (align = 1x1 conv, folded into weights), float32
    kt2, c_in2, c_out2, act2 = 3, 8, 4, "relu"
    kx2, kp2 = jax.random.split(jax.random.PRNGKey(1))
    x2 = jax.random.normal(kx2, (B, c_in2, T, N), jnp.float32)
    cw2, cb2, aw2, ab2 = _make_params(kp2, kt2, c_in2, c_out2, act2)
    out2 = temporal_conv_layer_forward(x2, cw2, cb2, aw2, ab2,
                                       kt=kt2, c_in=c_in2, c_out=c_out2, act=act2)
    out2 = jax.block_until_ready(out2)
    ref2 = _reference(x2, cw2, cb2, aw2, ab2,
                      kt=kt2, c_in=c_in2, c_out=c_out2, act=act2)
    assert out2.shape == (B, c_out2, T - kt2 + 1, N)
    assert jnp.allclose(out2, ref2, rtol=1e-4, atol=1e-4)

    # Config 3: sigmoid activation, c_in == c_out (identity align), bf16 storage / f32 accum
    kt3, c_in3, c_out3, act3 = 3, 8, 8, "sigmoid"
    kx3, kp3 = jax.random.split(jax.random.PRNGKey(2))
    x3 = jax.random.normal(kx3, (B, c_in3, T, N), jnp.float32)
    cw3, cb3, aw3, ab3 = _make_params(kp3, kt3, c_in3, c_out3, act3)
    out3 = temporal_conv_layer_forward(x3, cw3, cb3, aw3, ab3,
                                       kt=kt3, c_in=c_in3, c_out=c_out3, act=act3,
                                       param_dtype=jnp.bfloat16)
    out3 = jax.block_until_ready(out3)
    ref3 = _reference(x3, cw3, cb3, aw3, ab3,
                      kt=kt3, c_in=c_in3, c_out=c_out3, act=act3)
    assert out3.shape == (B, c_out3, T - kt3 + 1, N)
    assert jnp.allclose(out3, ref3, rtol=3e-2, atol=3e-2)  # bf16 inputs -> looser tolerance

    print("KERNEL_OK")
</pallas_src>

<mosaic_0001>
module attributes {stable_mosaic.version = 11 : i64} {
  func.func @_tconv_kernel(%arg0: i32, %arg1: memref<1x4x192xf32, #tpu.memory_space<vmem>>, %arg2: memref<16x12xf32, #tpu.memory_space<vmem>>, %arg3: memref<16x1xf32, #tpu.memory_space<vmem>>, %arg4: memref<1x8x160xf32, #tpu.memory_space<vmem>>) attributes {dimension_semantics = [#tpu.dimension_semantics<parallel>], iteration_bounds = array<i64: 2>, scalar_prefetch = 0 : i64, scratch_operands = 0 : i64, tpu.core_type = #tpu.core_type<tc>, window_params = [{transform_indices = @transform_0, window_bounds = array<i64: 1, 4, 192>}, {pipeline_mode = #tpu.pipeline_mode<synchronous>, transform_indices = @transform_1, window_bounds = array<i64: 16, 12>}, {pipeline_mode = #tpu.pipeline_mode<synchronous>, transform_indices = @transform_2, window_bounds = array<i64: 16, 1>}, {transform_indices = @transform_3, window_bounds = array<i64: 1, 8, 160>}]} {
    %c0 = arith.constant 0 : index
    %c0_0 = arith.constant 0 : index
    %0 = vector.load %arg2[%c0, %c0_0] : memref<16x12xf32, #tpu.memory_space<vmem>>, vector<16x12xf32>
    %c0_1 = arith.constant 0 : index
    %c0_2 = arith.constant 0 : index
    %1 = vector.load %arg3[%c0_1, %c0_2] : memref<16x1xf32, #tpu.memory_space<vmem>>, vector<16x1xf32>
    %c0_3 = arith.constant 0 : index
    %c0_4 = arith.constant 0 : index
    %c0_5 = arith.constant 0 : index
    %2 = vector.load %arg1[%c0_3, %c0_4, %c0_5] : memref<1x4x192xf32, #tpu.memory_space<vmem>>, vector<1x4x192xf32>
    %3 = vector.shape_cast %2 : vector<1x4x192xf32> to vector<4x192xf32>
    %4 = vector.extract_strided_slice %3 {offsets = [0, 0], sizes = [4, 160], strides = [1, 1]} : vector<4x192xf32> to vector<4x160xf32>
    %5 = vector.extract_strided_slice %3 {offsets = [0, 16], sizes = [4, 160], strides = [1, 1]} : vector<4x192xf32> to vector<4x160xf32>
    %6 = vector.extract_strided_slice %3 {offsets = [0, 32], sizes = [4, 160], strides = [1, 1]} : vector<4x192xf32> to vector<4x160xf32>
    %7 = tpu.concatenate %4, %5, %6 in 0 : vector<4x160xf32>, vector<4x160xf32>, vector<4x160xf32> -> vector<12x160xf32>
    %cst = arith.constant dense<0.000000e+00> : vector<16x160xf32>
    %8 = tpu.matmul %0, %7, %cst {dimension_numbers = #tpu.dot_dimension_numbers<[1], [0], [0], [1], [0, 0, 1, 1], [], []>} : vector<16x12xf32>, vector<12x160xf32>, vector<16x160xf32> -> vector<16x160xf32>
    %9 = vector.broadcast %1 : vector<16x1xf32> to vector<16x160xf32>
    %10 = arith.addf %8, %9 : vector<16x160xf32>
    %11 = vector.extract_strided_slice %10 {offsets = [0, 0], sizes = [8, 160], strides = [1, 1]} : vector<16x160xf32> to vector<8x160xf32>
    %12 = vector.extract_strided_slice %10 {offsets = [8, 0], sizes = [8, 160], strides = [1, 1]} : vector<16x160xf32> to vector<8x160xf32>
    %13 = arith.negf %12 : vector<8x160xf32>
    %14 = math.exp %13 : vector<8x160xf32>
    %cst_6 = arith.constant 1.000000e+00 : f32
    %15 = vector.broadcast %cst_6 : f32 to vector<8x160xf32>
    %16 = arith.addf %15, %14 : vector<8x160xf32>
    %17 = arith.divf %15, %16 : vector<8x160xf32>
    %18 = arith.mulf %11, %17 : vector<8x160xf32>
    %c0_7 = arith.constant 0 : index
    %c0_8 = arith.constant 0 : index
    %c0_9 = arith.constant 0 : index
    %19 = vector.load %arg4[%c0_7, %c0_8, %c0_9] : memref<1x8x160xf32, #tpu.memory_space<vmem>>, vector<1x8x160xf32>
    %20 = vector.shape_cast %19 : vector<1x8x160xf32> to vector<8x160xf32>
    %21 = vector.shape_cast %18 : vector<8x160xf32> to vector<1x8x160xf32>
    tpu.vector_store %arg4[%c0_7, %c0_8, %c0_9], %21 {strides = array<i32>} : memref<1x8x160xf32, #tpu.memory_space<vmem>>, vector<1x8x160xf32>,
    return
  }
  func.func @transform_0(%arg0: i32) -> (i32, i32, i32) {
    %c0_i32 = arith.constant 0 : i32
    %c0_i32_0 = arith.constant 0 : i32
    %c0_i32_1 = arith.constant 0 : i32
    return %arg0, %c0_i32, %c0_i32_0 : i32, i32, i32
  }
  func.func @transform_1(%arg0: i32) -> (i32, i32) {
    %c0_i32 = arith.constant 0 : i32
    %c0_i32_0 = arith.constant 0 : i32
    %c0_i32_1 = arith.constant 0 : i32
    return %c0_i32, %c0_i32_0 : i32, i32
  }
  func.func @transform_2(%arg0: i32) -> (i32, i32) {
    %c0_i32 = arith.constant 0 : i32
    %c0_i32_0 = arith.constant 0 : i32
    %c0_i32_1 = arith.constant 0 : i32
    return %c0_i32, %c0_i32_0 : i32, i32
  }
  func.func @transform_3(%arg0: i32) -> (i32, i32, i32) {
    %c0_i32 = arith.constant 0 : i32
    %c0_i32_0 = arith.constant 0 : i32
    %c0_i32_1 = arith.constant 0 : i32
    return %arg0, %c0_i32, %c0_i32_0 : i32, i32, i32
  }
}

</mosaic_0001>

<llo_original>
// kernel: tpu_custom_call.1
$region0: #{tpu_custom_call.1}
  #allocation0 [shape = 'u32[]', space=smem, size = 0x4, offset = 0x4, fixed_abs, tag = 'smem constant byte address 0x4 - core index']
  #allocation1 [shape = 'u32[72,128]{1,0:T(1,128)}', space=vmem, size = 0x9000, scoped, tag = 'internal scratch']
  %s0 = inlined_call_operand.vmem [shape: f32[2,4,192], index: 0, kind: input, shape index: {}]
  %s1 = inlined_call_operand.hbm [shape: f32[16,12], index: 1, kind: input, shape index: {}]
  %s2 = inlined_call_operand.vmem [shape: f32[16,1], index: 2, kind: input, shape index: {}]
  %s3 = inlined_call_operand.hbm [shape: f32[2,8,160], index: 3, kind: output, shape index: {}]
  %s4 = sld [smem:[#allocation0]]
  $region49: #{tpu_custom_call.1} parent=0
    _
  %s6 = ssub.s32 1, %s4
  %s7 = scalar_select 0, %s6, %s4
  $region1: #{tpu_custom_call.1} parent=0
    #allocation2 [shape = 'u8[8192]{0}', space=vmem, size = 0x2000, scoped, tag = 'input window, operand 1, single buffered']
    #allocation3 [shape = 's32[2]{0}', space=sflag, size = 0x8, scoped, tag = 'scoped memory for tpu_custom_call.1']
    #allocation4 [shape = 's32[2]{0}', space=sflag, size = 0x8, scoped, tag = 'scoped memory for tpu_custom_call.1']
    #allocation5 [shape = 'u8[16384]{0}', space=vmem, size = 0x4000, scoped, tag = 'output window, operand 0']
    %8 = vsyncpa [#allocation3], 0
    %9 = vsyncpa [#allocation4], 0
    %s10 = scalar_lea.sflag [#allocation4], 1
    %11 = vsyncpa %s10, 0
    loop: start=0, step=1, limit=4
    $region2: #{tpu_custom_call.1} parent=1 // loop_pre_header
      _
    $region3: #{tpu_custom_call.1} parent=1 // loop_header
      %s13 = sphi 0, %s17
      %p14 = scmp.ge.s32.totalorder %s13, 4
      %s23 = sphi 0, %s25
      %s26 = sphi 0, %s23
      %s27 = sphi 0, %s26
      %s43 = sphi 0, %s27
      %s47 = sphi 0, %s47
      %s49 = sphi 0, %s47
      %s50 = sphi 0, %s49
      %s64 = sphi 0, %s50
      %s68 = sphi 0, %s68
      %s70 = sphi 0, %s68
      %s71 = sphi 0, %s70
      %s85 = sphi 0, %s71
      %s91 = sphi 0, %s93
      %s94 = sphi 0, %s91
      %s95 = sphi 0, %s94
      %s111 = sphi 0, %s95
    $region4: #{tpu_custom_call.1} parent=1 // loop_header_branch
      %16 = sbr.rel (%p14) target = $region8
    $region5: #{tpu_custom_call.1} parent=1 // loop_body
      %s18 = ssub.s32 %s13, 1
      %s19 = ssub.s32 %s13, 2
      %s20 = sadd.s32 %s13, 1
      %s21 = ssub.s32 %s13, %s20
      %p22 = scmp.eq.s32.totalorder %s21, 0
      %s24 = sadd.s32 %s23, 1
      %s25 = scalar_select %p22, %s23, %s24
      %p28 = pneg %p22
      %p29 = scmp.eq.s32.totalorder %s13, 1
      %p30 = por %p28, %p29
      %p31 = scmp.ne.s32.totalorder %s23, %s26
      %p32 = scmp.eq.s32.totalorder %s13, 0
      %p33 = por %p31, %p32
      %p34 = scmp.ne.s32.totalorder %s23, %s26
      %p35 = scmp.eq.s32.totalorder %s18, 1
      %p36 = por %p34, %p35
      %p37 = scmp.ne.s32.totalorder %s26, %s27
      %p38 = scmp.eq.s32.totalorder %s18, 0
      %p39 = por %p37, %p38
      %p40 = scmp.ne.s32.totalorder %s26, %s27
      %p41 = scmp.eq.s32.totalorder %s19, 1
      %p42 = por %p40, %p41
      %p44 = scmp.ne.s32.totalorder %s27, %s43
      %p45 = scmp.eq.s32.totalorder %s19, 0
      %p46 = por %p44, %p45
      %s48 = sadd.s32 %s47, 1
      %p51 = scmp.eq.s32.totalorder %s13, 1
      %p52 = scmp.ne.s32.totalorder %s47, %s49
      %p53 = scmp.eq.s32.totalorder %s13, 0
      %p54 = por %p52, %p53
      %p55 = scmp.ne.s32.totalorder %s47, %s49
      %p56 = scmp.eq.s32.totalorder %s18, 1
      %p57 = por %p55, %p56
      %p58 = scmp.ne.s32.totalorder %s49, %s50
      %p59 = scmp.eq.s32.totalorder %s18, 0
      %p60 = por %p58, %p59
      %p61 = scmp.ne.s32.totalorder %s49, %s50
      %p62 = scmp.eq.s32.totalorder %s19, 1
      %p63 = por %p61, %p62
      %p65 = scmp.ne.s32.totalorder %s50, %s64
      %p66 = scmp.eq.s32.totalorder %s19, 0
      %p67 = por %p65, %p66
      %s69 = sadd.s32 %s68, 1
      %p72 = scmp.eq.s32.totalorder %s13, 1
      %p73 = scmp.ne.s32.totalorder %s68, %s70
      %p74 = scmp.eq.s32.totalorder %s13, 0
      %p75 = por %p73, %p74
      %p76 = scmp.ne.s32.totalorder %s68, %s70
      %p77 = scmp.eq.s32.totalorder %s18, 1
      %p78 = por %p76, %p77
      %p79 = scmp.ne.s32.totalorder %s70, %s71
      %p80 = scmp.eq.s32.totalorder %s18, 0
      %p81 = por %p79, %p80
      %p82 = scmp.ne.s32.totalorder %s70, %s71
      %p83 = scmp.eq.s32.totalorder %s19, 1
      %p84 = por %p82, %p83
      %p86 = scmp.ne.s32.totalorder %s71, %s85
      %p87 = scmp.eq.s32.totalorder %s19, 0
      %p88 = por %p86, %p87
      %s89 = ssub.s32 %s13, %s20
      %p90 = scmp.eq.s32.totalorder %s89, 0
      %s92 = sadd.s32 %s91, 1
      %s93 = scalar_select %p90, %s91, %s92
      %p96 = pneg %p90
      %p97 = scmp.eq.s32.totalorder %s13, 1
      %p98 = por %p96, %p97
      %p99 = scmp.ne.s32.totalorder %s91, %s94
      %p100 = scmp.eq.s32.totalorder %s13, 0
      %p101 = por %p99, %p100
      %p102 = scmp.ne.s32.totalorder %s91, %s94
      %p103 = scmp.eq.s32.totalorder %s18, 1
      %p104 = por %p102, %p103
      %p105 = scmp.ne.s32.totalorder %s94, %s95
      %p106 = scmp.eq.s32.totalorder %s18, 0
      %p107 = por %p105, %p106
      %p108 = scmp.ne.s32.totalorder %s94, %s95
      %p109 = scmp.eq.s32.totalorder %s19, 1
      %p110 = por %p108, %p109
      %p112 = scmp.ne.s32.totalorder %s95, %s111
      %p113 = scmp.eq.s32.totalorder %s19, 0
      %p114 = por %p112, %p113
      %p115 = scmp.le.s32.totalorder 1, %s13
      %p116 = scmp.lt.s32.totalorder %s13, 3
      %p117 = pnand %p115, %p116
      %p118 = pneg %p117
      // Predicated region
      $region9: #{tpu_custom_call.1} parent=5 // pred_check
        _
      $region10: #{tpu_custom_call.1} parent=5 // pred_check_branch
        %120 = sbr.rel (%p117) target = $region12
      $region11: #{tpu_custom_call.1} parent=5 // pred_region
        %s121 = ssub.s32 %s13, 1
        // Predicated region
        $region13: #{tpu_custom_call.1} parent=11 // pred_check
          %p122 = pneg %p60
        $region14: #{tpu_custom_call.1} parent=11 // pred_check_branch
          %124 = sbr.rel (%p122) target = $region16
        $region15: #{tpu_custom_call.1} parent=11 // pred_region
          %126 = vsyncadd [#allocation3], 0
          %s127 = sshll.u32 %s1, 4
          %s128 = int_to_ptr.hbm [resolvable:$true] %s127
          %s129 = sshll.u32 [#allocation2], 4
          %s130 = int_to_ptr.vmem [resolvable:$true] %s129
          %135 = dma.hbm_to_vmem [thread:$0]  %s128, 256, %s130, [#allocation3], 128, 128, 8
        $region16: #{tpu_custom_call.1} parent=11 // pred_fallthru
          _
        // Predicated region
        $region17: #{tpu_custom_call.1} parent=11 // pred_check
          %p136 = pneg %p81
        $region18: #{tpu_custom_call.1} parent=11 // pred_check_branch
          %138 = sbr.rel (%p136) target = $region20
        $region19: #{tpu_custom_call.1} parent=11 // pred_region
          _
        $region20: #{tpu_custom_call.1} parent=11 // pred_fallthru
          _
      $region12: #{tpu_custom_call.1} parent=5 // pred_fallthru
        _
      %p139 = scmp.lt.s32.totalorder %s13, 2
      // Predicated region
      $region21: #{tpu_custom_call.1} parent=5 // pred_check
        %p140 = pneg %p139
      $region22: #{tpu_custom_call.1} parent=5 // pred_check_branch
        %142 = sbr.rel (%p140) target = $region24
      $region23: #{tpu_custom_call.1} parent=5 // pred_region
        // Predicated region
        $region25: #{tpu_custom_call.1} parent=23 // pred_check
          %p143 = pneg %p33
        $region26: #{tpu_custom_call.1} parent=23 // pred_check_branch
          %145 = sbr.rel (%p143) target = $region28
        $region27: #{tpu_custom_call.1} parent=23 // pred_region
          %p146 = scmp.lt.s32.totalorder %s13, 1
          %s147 = scalar_select %p146, %s13, 1
          %s148 = smul.addr %s147, 2
          %s149 = smul.addr %s148, 4
          %s150 = scalar_lea.vmem %s0, %s149
        $region28: #{tpu_custom_call.1} parent=23 // pred_fallthru
          _
      $region24: #{tpu_custom_call.1} parent=5 // pred_fallthru
        _
      %p151 = scmp.le.s32.totalorder 1, %s13
      %p152 = scmp.lt.s32.totalorder %s13, 3
      %p153 = pnand %p151, %p152
      %p154 = pneg %p153
      // Predicated region
      $region29: #{tpu_custom_call.1} parent=5 // pred_check
        _
      $region30: #{tpu_custom_call.1} parent=5 // pred_check_branch
        %156 = sbr.rel (%p153) target = $region32
      $region31: #{tpu_custom_call.1} parent=5 // pred_region
        %s157 = ssub.s32 %s13, 1
        // Predicated region
        $region33: #{tpu_custom_call.1} parent=31 // pred_check
          %p158 = pneg %p60
        $region34: #{tpu_custom_call.1} parent=31 // pred_check_branch
          %160 = sbr.rel (%p158) target = $region36
        $region35: #{tpu_custom_call.1} parent=31 // pred_region
          %162 = dma.done [#allocation3], 256
        $region36: #{tpu_custom_call.1} parent=31 // pred_fallthru
          _
        %p163 = scmp.lt.s32.totalorder %s18, 1
        %s164 = scalar_select %p163, %s18, 1
        %s165 = smul.addr %s164, 2
        %s166 = smul.addr %s165, 4
        %s167 = scalar_lea.vmem %s0, %s166
        %p168 = pneg %p39
        %p169 = pneg %p36
        %p170 = pneg %p60
        %p171 = pneg %p57
        %p172 = pneg %p81
        %p173 = pneg %p78
        %p174 = pneg %p107
        %p175 = pneg %p104
        %s176 = sand.u32 %s94, 1
        %s177 = scalar_lea.sflag [#allocation4], %s176
        %s178 = sand.u32 %s94, 1
        %s179 = smul.addr %s178, 16
        %s180 = scalar_lea.vmem [#allocation5], %s179
        %p181 = scmp.lt.s32.totalorder %s18, 1
        %s182 = scalar_select %p181, %s18, 1
        %s183 = smul.addr %s182, 2
        %s184 = smul.addr %s183, 4
        %s185 = scalar_lea.vmem %s0, %s184
        %v186 = vld [vmem:[#allocation2] sm:$0xff]
        %v187 = vld [vmem:[#allocation2 + $0x8] sm:$0xff]
        %v188 = vld [vmem:[%s2] sm:$0xff]
        %v189 = vld [vmem:[%s2 + $0x8] sm:$0xff]
        %v190 = vld [vmem:[%s185] sm:$0xff]
        %192 = vst [vmem:[#allocation1] ss:$2 sm:$0xff] %v190
        %v193 = vld.sshfl [vmem:[#allocation1] sm:$0xff pattern:$0x75316420]
        %v194 = vld.sshfl [vmem:[#allocation1 + $0x8] sm:$0xff pattern:$0x75316420]
        %s197 = scalar_lea.vmem [#allocation1], 1
        %198 = vst [vmem:[%s197] ss:$2 sm:$0xff] %v190
        %v199 = vld.sshfl [vmem:[#allocation1] sm:$0xff pattern:$0x75316420]
        %v200 = vld.sshfl [vmem:[#allocation1 + $0x8] sm:$0xff pattern:$0x75316420]
        %201 = vrot.lane.b32.xlu0 %v199, 112
        %v202 = vpop.permute.xlu0 %201
        %203 = vrot.lane.b32.xlu0 %v200, 112
        %v204 = vpop.permute.xlu0 %203
        %vm205 = vcmask 916480
        %v206 = vsel %vm205, %v202, %v204
        %209 = vst [vmem:[#allocation1] ss:$2 sm:$0xff] %v190
        %v210 = vld.sshfl [vmem:[#allocation1] sm:$0xff pattern:$0x75316420]
        %v211 = vld.sshfl [vmem:[#allocation1 + $0x8] sm:$0xff pattern:$0x75316420]
        %212 = vrot.lane.b32.xlu0 %v210, 96
        %v213 = vpop.permute.xlu0 %212
        %214 = vrot.lane.b32.xlu0 %v211, 96
        %v215 = vpop.permute.xlu0 %214
        %vm216 = vcmask 785408
        %v217 = vsel %vm216, %v213, %v215
        %vm218 = vcmask 1043456
        %v219 = vsel %vm218, %v193, %v206
        %v220 = vsel %vm218, %v194, %v204
        %222 = vset.pattern.permute.xlu0 0
        %223 = vperm.xlu0 %222, %v188
        %v224 = vpop.permute.xlu0 %223
        %227 = vset.pattern.permute.xlu0 0
        %228 = vperm.xlu0 %227, %v189
        %v229 = vpop.permute.xlu0 %228
        %vm231 = vcmask 97280
        %v233 = vsel %vm231, %v186, 0
        %v236 = vsel %vm231, %v187, 0
        %v238 = vsel %vm218, %v217, 0
        %v240 = vsel %vm218, %v215, 0
        %242 = vmatpush.msra.mxu0 0.0
        %243 = vmatpush.msra.mxu0 0.0
        %244 = vmatpush.msra.mxu0 0.0
        %245 = vmatpush.msra.mxu0 0.0
        %246 = vmatpush.msra.mxu0 0.0
        %247 = vmatpush.msra.mxu0 0.0
        %248 = vmatpush.msra.mxu0 0.0
        %249 = vmatpush.msra.mxu0 0.0
        %250 = vmatpush.msra.mxu0 0.0
        %251 = vmatpush.msra.mxu0 0.0
        %252 = vmatpush.msra.mxu0 0.0
        %253 = vmatpush.msra.mxu0 0.0
        %254 = vmatpush.msra.mxu0 0.0
        %255 = vmatpush.msra.mxu0 0.0
        %256 = vmatpush.msra.mxu0 %v238
        %257 = vmatpush.msra.mxu0 %v219
        %258 = vmatmul.f32.gmra.mxu0 %v233
        %v259 = vpop.f32.mrf.mxu0
        %v260 = vadd.f32 %v224, %v259
        %261 = vmatmul.f32.gmra.mxu0 %v236
        %v262 = vpop.f32.mrf.mxu0
        %v263 = vadd.f32 %v229, %v262
        %264 = vdwg.mxu0
        %265 = vmatpush.msra.mxu0 0.0
        %266 = vmatpush.msra.mxu0 0.0
        %267 = vmatpush.msra.mxu0 0.0
        %268 = vmatpush.msra.mxu0 0.0
        %269 = vmatpush.msra.mxu0 0.0
        %270 = vmatpush.msra.mxu0 0.0
        %271 = vmatpush.msra.mxu0 0.0
        %272 = vmatpush.msra.mxu0 0.0
        %273 = vmatpush.msra.mxu0 0.0
        %274 = vmatpush.msra.mxu0 0.0
        %275 = vmatpush.msra.mxu0 0.0
        %276 = vmatpush.msra.mxu0 0.0
        %277 = vmatpush.msra.mxu0 0.0
        %278 = vmatpush.msra.mxu0 0.0
        %279 = vmatpush.msra.mxu0 %v240
        %280 = vmatpush.msra.mxu0 %v220
        %281 = vmatmul.f32.gmra.mxu0 %v233
        %v282 = vpop.f32.mrf.mxu0
        %v283 = vadd.f32 %v224, %v282
        %284 = vmatmul.f32.gmra.mxu0 %v236
        %v285 = vpop.f32.mrf.mxu0
        %v286 = vadd.f32 %v229, %v285
        %287 = vdwg.mxu0
        %v288 = vxor.u32 %v263, 2147483648
        %v289 = vxor.u32 %v286, 2147483648
        %v290 = vmul.f32 %v288, 1.442695
        %v291 = vpow.pop %v290
        %v292 = vmul.f32 %v289, 1.442695
        %v293 = vpow.pop %v292
        %v294 = vadd.f32 %v291, 1.0
        %v295 = vadd.f32 %v293, 1.0
        %v296 = vrcp.pop %v294
        %v297 = vmul.f32 %v294, %v296
        %v298 = vsub.f32 1.0, %v297
        %v299 = vmul.f32 %v296, %v298
        %v300 = vadd.f32 %v296, %v299
        %vm301 = vweird.f32 %v294
        %vm302 = vweird.f32 %v296
        %vm303 = vmor %vm301, %vm302
        %v304 = vsel %vm303, %v296, %v300
        %v305 = vand.u32 2147483647, %v294
        %vm306 = vcmp.eq.f32.partialorder %v305, 8.507059e+37
        %v307 = vand.u32 %v294, 2147483648
        %v308 = vor.u32 1.1754944e-38, %v307
        %v309 = vsel %vm306, %v308, %v304
        %v310 = vmul.f32 1.0, %v309
        %v311 = vrcp.pop %v295
        %v312 = vmul.f32 %v295, %v311
        %v313 = vsub.f32 1.0, %v312
        %v314 = vmul.f32 %v311, %v313
        %v315 = vadd.f32 %v311, %v314
        %vm316 = vweird.f32 %v295
        %vm317 = vweird.f32 %v311
        %vm318 = vmor %vm316, %vm317
        %v319 = vsel %vm318, %v311, %v315
        %v320 = vand.u32 2147483647, %v295
        %vm321 = vcmp.eq.f32.partialorder %v320, 8.507059e+37
        %v322 = vand.u32 %v295, 2147483648
        %v323 = vor.u32 1.1754944e-38, %v322
        %v324 = vsel %vm321, %v323, %v319
        %v325 = vmul.f32 1.0, %v324
        %v326 = vmul.f32 %v260, %v310
        %v327 = vmul.f32 %v283, %v325
        %328 = vst [vmem:[%s180] sm:$0xff] %v326
        %vm329 = vcmask 261120
        %330 = vst.msk [vmem:[%s180 + $0x8] sm:$0xff] %vm329, %v327
        %s331 = sand.u32 %s94, 1
        %s332 = scalar_lea.sflag [#allocation4], %s331
        %s333 = sand.u32 %s94, 1
        %s334 = smul.addr %s333, 16
        %s335 = scalar_lea.vmem [#allocation5], %s334
        // Predicated region
        $region37: #{tpu_custom_call.1} parent=31 // pred_check
          %p336 = pneg %p104
        $region38: #{tpu_custom_call.1} parent=31 // pred_check_branch
          %338 = sbr.rel (%p336) target = $region40
        $region39: #{tpu_custom_call.1} parent=31 // pred_region
          %340 = vsyncadd %s332, 0
          %s341 = smul.addr %s18, 2
          %s342 = smul.addr %s341, 8
          %s343 = scalar_lea.hbm %s3, %s342
          %s345 = sshll.u32 %s335, 4
          %s346 = int_to_ptr.vmem [resolvable:$true] %s345
          %s347 = sshll.u32 %s343, 4
          %s348 = int_to_ptr.hbm [resolvable:$true] %s347
          %350 = dma.vmem_to_hbm [thread:$0]  %s346, 256, %s348, %s332
        $region40: #{tpu_custom_call.1} parent=31 // pred_fallthru
          _
      $region32: #{tpu_custom_call.1} parent=5 // pred_fallthru
        _
      %p351 = scmp.le.s32.totalorder 2, %s13
      // Predicated region
      $region41: #{tpu_custom_call.1} parent=5 // pred_check
        %p352 = pneg %p351
      $region42: #{tpu_custom_call.1} parent=5 // pred_check_branch
        %354 = sbr.rel (%p352) target = $region44
      $region43: #{tpu_custom_call.1} parent=5 // pred_region
        %s355 = ssub.s32 %s13, 2
        // Predicated region
        $region45: #{tpu_custom_call.1} parent=43 // pred_check
          %p356 = pneg %p110
        $region46: #{tpu_custom_call.1} parent=43 // pred_check_branch
          %358 = sbr.rel (%p356) target = $region48
        $region47: #{tpu_custom_call.1} parent=43 // pred_region
          %s359 = sand.u32 %s95, 1
          %s360 = scalar_lea.sflag [#allocation4], %s359
          %s361 = sand.u32 %s95, 1
          %s362 = smul.addr %s361, 16
          %s363 = scalar_lea.vmem [#allocation5], %s362
          %365 = dma.done %s360, 256
        $region48: #{tpu_custom_call.1} parent=43 // pred_fallthru
          _
      $region44: #{tpu_custom_call.1} parent=5 // pred_fallthru
        _
    $region6: #{tpu_custom_call.1} parent=1 // loop_footer
      %s17 = sadd.s32 1, %s13
    $region7: #{tpu_custom_call.1} parent=1 // loop_footer_branch
      %12 = sbr.rel target = $region3
    $region8: #{tpu_custom_call.1} parent=1 // loop_exit
      _
    %366 = vsyncpa [#allocation3], 1
    %s367 = scalar_lea.sflag [#allocation3], 1
    %368 = vsyncpa %s367, 1
    %369 = vsyncpa [#allocation4], 1
    %s370 = scalar_lea.sflag [#allocation4], 1
    %371 = vsyncpa %s370, 1

</llo_original>
